<compile_context>
chip_gen: v7x
topology: tpu7x:2x2x1
jax: 0.10.0
libtpu: 0.0.40
codegen_flags: <defaults>
</compile_context>

<pallas_src>
import functools

import jax
import jax.numpy as jnp
from jax.experimental import pallas as pl
from jax.experimental.pallas import tpu as pltpu

LANE = 128      # TPU lane width: pad feature dims to this for dense VMEM compute
MAX_TB = 4096   # cap on the batch tile; sweep 2048-8192 for very large B
MIN_TILES = 8   # keep >= 8 grid steps so v7x's 2 TCs each get pipelined work


def _sigmoid(x):
    # 1 / (1 + exp(-x)); exp and the approximate reciprocal both run on the EUP
    # slot, which is otherwise idle while MXU/VALU handle matmuls and adds.
    return pl.reciprocal(1.0 + jnp.exp(-x), approx=True)


def _pick_tb(batch):
    # Aim for >= MIN_TILES grid steps, round TB to a multiple of 8 sublanes,
    # and cap at MAX_TB so VMEM intermediates stay small.
    tb = -(-batch // MIN_TILES)          # ceil(B / MIN_TILES)
    tb = ((tb + 7) // 8) * 8             # multiple of 8 (sublane alignment)
    return max(8, min(MAX_TB, tb))


def mlp_kernel(x_ref, w1_ref, b1_ref, w2_ref, b2_ref, o_ref, *, d_out):
    # linear1 + sigmoid:  (TB, D_in) @ (D_in, HP) -> (TB, HP)
    h = jnp.dot(x_ref[...], w1_ref[...], preferred_element_type=jnp.float32)
    h = _sigmoid(h + b1_ref[...])                        # (TB, HP) + (1, HP)
    # linear2 + sigmoid:  (TB, HP) @ (HP, OP) -> (TB, OP); padded rows of w2
    # are zero, so the 0.5-valued padded hidden units contribute nothing.
    y = jnp.dot(h, w2_ref[...], preferred_element_type=jnp.float32)
    y = _sigmoid(y + b2_ref[...])
    # Compact store: only the real D_out lanes go back to HBM.
    o_ref[...] = y[:, :d_out].astype(o_ref.dtype)


def prepare_padded_params(w1, b1, w2, b2):
    """Pad feature dims to 128 lanes once; reuse across forward calls.

    w1: (D_in, H), b1: (H,), w2: (H, D_out), b2: (D_out,)  — x @ W layout.
    """
    D_in, H = w1.shape
    D_out = w2.shape[1]
    HP = ((H + LANE - 1) // LANE) * LANE
    OP = ((D_out + LANE - 1) // LANE) * LANE
    w1p = jnp.zeros((D_in, HP), jnp.float32).at[:, :H].set(w1)
    b1p = jnp.zeros((1, HP), jnp.float32).at[:, :H].set(b1.reshape(1, H))
    w2p = jnp.zeros((HP, OP), jnp.float32).at[:H, :D_out].set(w2)  # padded rows stay zero
    b2p = jnp.zeros((1, OP), jnp.float32).at[:, :D_out].set(b2.reshape(1, D_out))
    return w1p, b1p, w2p, b2p, D_out


def solution_model_forward(x, padded_params):
    """Forward pass of SolutionModel. x: (B, D_in) f32."""
    w1p, b1p, w2p, b2p, D_out = padded_params
    B, D_in = x.shape
    HP = w1p.shape[1]
    OP = w2p.shape[1]

    TB = _pick_tb(B)
    n_tiles = pl.cdiv(B, TB)   # non-divisible grid is handled by Pallas (tail
                               # reads are junk, tail writes are dropped)

    return pl.pallas_call(
        functools.partial(mlp_kernel, d_out=D_out),
        out_shape=jax.ShapeDtypeStruct((B, D_out), jnp.float32),
        grid=(n_tiles,),
        in_specs=[
            pl.BlockSpec((TB, D_in), lambda i: (i, 0)),   # streamed batch tile
            pl.BlockSpec((D_in, HP), lambda i: (0, 0)),   # weights stay resident
            pl.BlockSpec((1, HP),    lambda i: (0, 0)),
            pl.BlockSpec((HP, OP),   lambda i: (0, 0)),
            pl.BlockSpec((1, OP),    lambda i: (0, 0)),
        ],
        # Compact (TB, D_out) output block: D_out equals the full last dim.
        out_specs=pl.BlockSpec((TB, D_out), lambda i: (i, 0)),
        compiler_params=pltpu.CompilerParams(
            # batch tiles are independent -> shard across v7x's 2 TensorCores
            dimension_semantics=("parallel",),
        ),
    )(x, w1p, b1p, w2p, b2p)


def reference_forward(x, w1, b1, w2, b2):
    h = jax.nn.sigmoid(x @ w1 + b1)
    return jax.nn.sigmoid(h @ w2 + b2)


if __name__ == "__main__":
    # Shapes consistent with the module: input_size=8, hidden=10, output_size=4.
    # B=256 exercises the batch grid (8 tiles of 32) and megacore sharding.
    B, D_in, H, D_out = 256, 8, 10, 4

    key = jax.random.PRNGKey(0)
    kx, kw1, kb1, kw2, kb2 = jax.random.split(key, 5)

    x = jax.random.normal(kx, (B, D_in), dtype=jnp.float32)
    # nn.Linear-style init scale; deterministic here.
    w1 = jax.random.uniform(kw1, (D_in, H), jnp.float32, -1.0, 1.0) / jnp.sqrt(D_in)
    b1 = jax.random.uniform(kb1, (H,), jnp.float32, -1.0, 1.0) / jnp.sqrt(D_in)
    w2 = jax.random.uniform(kw2, (H, D_out), jnp.float32, -1.0, 1.0) / jnp.sqrt(H)
    b2 = jax.random.uniform(kb2, (D_out,), jnp.float32, -1.0, 1.0) / jnp.sqrt(H)

    padded = prepare_padded_params(w1, b1, w2, b2)   # pad once, reuse per call
    out = solution_model_forward(x, padded)
    jax.block_until_ready(out)

    ref = reference_forward(x, w1, b1, w2, b2)
    assert out.shape == (B, D_out)
    # approx EUP reciprocal -> ~1e-4 abs error on sigmoid outputs in (0, 1)
    assert jnp.allclose(out, ref, atol=2e-3, rtol=0), "mismatch vs reference"

    print("KERNEL_OK")
</pallas_src>

<mosaic_0001>
module attributes {stable_mosaic.version = 11 : i64} {
  func.func @mlp_kernel(%arg0: i32, %arg1: memref<32x8xf32, #tpu.memory_space<vmem>>, %arg2: memref<8x128xf32, #tpu.memory_space<vmem>>, %arg3: memref<1x128xf32, #tpu.memory_space<vmem>>, %arg4: memref<128x128xf32, #tpu.memory_space<vmem>>, %arg5: memref<1x128xf32, #tpu.memory_space<vmem>>, %arg6: memref<32x4xf32, #tpu.memory_space<vmem>>) attributes {dimension_semantics = [#tpu.dimension_semantics<parallel>], iteration_bounds = array<i64: 8>, scalar_prefetch = 0 : i64, scratch_operands = 0 : i64, tpu.core_type = #tpu.core_type<tc>, window_params = [{transform_indices = @transform_0, window_bounds = array<i64: 32, 8>}, {pipeline_mode = #tpu.pipeline_mode<synchronous>, transform_indices = @transform_1, window_bounds = array<i64: 8, 128>}, {pipeline_mode = #tpu.pipeline_mode<synchronous>, transform_indices = @transform_2, window_bounds = array<i64: 1, 128>}, {pipeline_mode = #tpu.pipeline_mode<synchronous>, transform_indices = @transform_3, window_bounds = array<i64: 128, 128>}, {pipeline_mode = #tpu.pipeline_mode<synchronous>, transform_indices = @transform_4, window_bounds = array<i64: 1, 128>}, {transform_indices = @transform_5, window_bounds = array<i64: 32, 4>}]} {
    %c0 = arith.constant 0 : index
    %c0_0 = arith.constant 0 : index
    %0 = vector.load %arg1[%c0, %c0_0] : memref<32x8xf32, #tpu.memory_space<vmem>>, vector<32x8xf32>
    %c0_1 = arith.constant 0 : index
    %c0_2 = arith.constant 0 : index
    %1 = vector.load %arg2[%c0_1, %c0_2] : memref<8x128xf32, #tpu.memory_space<vmem>>, vector<8x128xf32>
    %cst = arith.constant dense<0.000000e+00> : vector<32x128xf32>
    %2 = tpu.matmul %0, %1, %cst {dimension_numbers = #tpu.dot_dimension_numbers<[1], [0], [0], [1], [0, 0, 1, 1], [], []>} : vector<32x8xf32>, vector<8x128xf32>, vector<32x128xf32> -> vector<32x128xf32>
    %c0_3 = arith.constant 0 : index
    %c0_4 = arith.constant 0 : index
    %3 = vector.load %arg3[%c0_3, %c0_4] : memref<1x128xf32, #tpu.memory_space<vmem>>, vector<1x128xf32>
    %4 = vector.broadcast %3 : vector<1x128xf32> to vector<32x128xf32>
    %5 = arith.addf %2, %4 : vector<32x128xf32>
    %cst_5 = arith.constant 0.000000e+00 : f32
    %6 = vector.broadcast %cst_5 : f32 to vector<32x128xf32>
    %7 = arith.subf %6, %5 : vector<32x128xf32>
    %8 = math.exp %7 : vector<32x128xf32>
    %cst_6 = arith.constant 1.000000e+00 : f32
    %9 = vector.broadcast %cst_6 : f32 to vector<32x128xf32>
    %10 = arith.addf %9, %8 : vector<32x128xf32>
    %11 = tpu.reciprocal %10 {approx = true} : vector<32x128xf32> -> vector<32x128xf32>
    %c0_7 = arith.constant 0 : index
    %c0_8 = arith.constant 0 : index
    %12 = vector.load %arg4[%c0_7, %c0_8] : memref<128x128xf32, #tpu.memory_space<vmem>>, vector<128x128xf32>
    %cst_9 = arith.constant dense<0.000000e+00> : vector<32x128xf32>
    %13 = tpu.matmul %11, %12, %cst_9 {dimension_numbers = #tpu.dot_dimension_numbers<[1], [0], [0], [1], [0, 0, 1, 1], [], []>} : vector<32x128xf32>, vector<128x128xf32>, vector<32x128xf32> -> vector<32x128xf32>
    %c0_10 = arith.constant 0 : index
    %c0_11 = arith.constant 0 : index
    %14 = vector.load %arg5[%c0_10, %c0_11] : memref<1x128xf32, #tpu.memory_space<vmem>>, vector<1x128xf32>
    %15 = vector.broadcast %14 : vector<1x128xf32> to vector<32x128xf32>
    %16 = arith.addf %13, %15 : vector<32x128xf32>
    %cst_12 = arith.constant 0.000000e+00 : f32
    %17 = vector.broadcast %cst_12 : f32 to vector<32x128xf32>
    %18 = arith.subf %17, %16 : vector<32x128xf32>
    %19 = math.exp %18 : vector<32x128xf32>
    %cst_13 = arith.constant 1.000000e+00 : f32
    %20 = vector.broadcast %cst_13 : f32 to vector<32x128xf32>
    %21 = arith.addf %20, %19 : vector<32x128xf32>
    %22 = tpu.reciprocal %21 {approx = true} : vector<32x128xf32> -> vector<32x128xf32>
    %23 = vector.extract_strided_slice %22 {offsets = [0, 0], sizes = [32, 4], strides = [1, 1]} : vector<32x128xf32> to vector<32x4xf32>
    %c0_14 = arith.constant 0 : index
    %c0_15 = arith.constant 0 : index
    %24 = vector.load %arg6[%c0_14, %c0_15] : memref<32x4xf32, #tpu.memory_space<vmem>>, vector<32x4xf32>
    tpu.vector_store %arg6[%c0_14, %c0_15], %23 {strides = array<i32>} : memref<32x4xf32, #tpu.memory_space<vmem>>, vector<32x4xf32>,
    return
  }
  func.func @transform_0(%arg0: i32) -> (i32, i32) {
    %c0_i32 = arith.constant 0 : i32
    %c0_i32_0 = arith.constant 0 : i32
    return %arg0, %c0_i32 : i32, i32
  }
  func.func @transform_1(%arg0: i32) -> (i32, i32) {
    %c0_i32 = arith.constant 0 : i32
    %c0_i32_0 = arith.constant 0 : i32
    %c0_i32_1 = arith.constant 0 : i32
    return %c0_i32, %c0_i32_0 : i32, i32
  }
  func.func @transform_2(%arg0: i32) -> (i32, i32) {
    %c0_i32 = arith.constant 0 : i32
    %c0_i32_0 = arith.constant 0 : i32
    %c0_i32_1 = arith.constant 0 : i32
    return %c0_i32, %c0_i32_0 : i32, i32
  }
  func.func @transform_3(%arg0: i32) -> (i32, i32) {
    %c0_i32 = arith.constant 0 : i32
    %c0_i32_0 = arith.constant 0 : i32
    %c0_i32_1 = arith.constant 0 : i32
    return %c0_i32, %c0_i32_0 : i32, i32
  }
  func.func @transform_4(%arg0: i32) -> (i32, i32) {
    %c0_i32 = arith.constant 0 : i32
    %c0_i32_0 = arith.constant 0 : i32
    %c0_i32_1 = arith.constant 0 : i32
    return %c0_i32, %c0_i32_0 : i32, i32
  }
  func.func @transform_5(%arg0: i32) -> (i32, i32) {
    %c0_i32 = arith.constant 0 : i32
    %c0_i32_0 = arith.constant 0 : i32
    return %arg0, %c0_i32 : i32, i32
  }
}

</mosaic_0001>

<llo_original>
// kernel: tpu_custom_call.1
$region0: #{tpu_custom_call.1}
  #allocation0 [shape = 'u32[]', space=smem, size = 0x4, offset = 0x4, fixed_abs, tag = 'smem constant byte address 0x4 - core index']
  #allocation1 [shape = 'u32[144,128]{1,0:T(1,128)}', space=vmem, size = 0x12000, scoped, tag = 'internal scratch']
  %s0 = inlined_call_operand.vmem [shape: f32[256,8], index: 0, kind: input, shape index: {}]
  %s1 = inlined_call_operand.vmem [shape: f32[8,128], index: 1, kind: input, shape index: {}]
  %s2 = inlined_call_operand.vmem [shape: f32[1,128], index: 2, kind: input, shape index: {}]
  %s3 = inlined_call_operand.vmem [shape: f32[128,128], index: 3, kind: input, shape index: {}]
  %s4 = inlined_call_operand.vmem [shape: f32[1,128], index: 4, kind: input, shape index: {}]
  %s5 = inlined_call_operand.vmem [shape: f32[256,4], index: 5, kind: output, shape index: {}]
  %s6 = sld [smem:[#allocation0]]
  $region53: #{tpu_custom_call.1} parent=0
    _
  %s8 = ssub.s32 1, %s6
  %s9 = scalar_select 0, %s8, %s6
  loop: start=0, step=1, limit=10
  $region2: #{tpu_custom_call.1} parent=0 // loop_pre_header
    _
  $region3: #{tpu_custom_call.1} parent=0 // loop_header
    %s11 = sphi 0, %s15
    %p12 = scmp.ge.s32.totalorder %s11, 10
    %s21 = sphi 0, %s23
    %s24 = sphi 0, %s21
    %s25 = sphi 0, %s24
    %s41 = sphi 0, %s25
    %s45 = sphi 0, %s45
    %s47 = sphi 0, %s45
    %s48 = sphi 0, %s47
    %s62 = sphi 0, %s48
    %s66 = sphi 0, %s66
    %s68 = sphi 0, %s66
    %s69 = sphi 0, %s68
    %s83 = sphi 0, %s69
    %s87 = sphi 0, %s87
    %s89 = sphi 0, %s87
    %s90 = sphi 0, %s89
    %s104 = sphi 0, %s90
    %s108 = sphi 0, %s108
    %s110 = sphi 0, %s108
    %s111 = sphi 0, %s110
    %s125 = sphi 0, %s111
    %s131 = sphi 0, %s133
    %s134 = sphi 0, %s131
    %s135 = sphi 0, %s134
    %s151 = sphi 0, %s135
  $region4: #{tpu_custom_call.1} parent=0 // loop_header_branch
    %14 = sbr.rel (%p12) target = $region8
  $region5: #{tpu_custom_call.1} parent=0 // loop_body
    %s16 = ssub.s32 %s11, 1
    %s17 = ssub.s32 %s11, 2
    %s18 = sadd.s32 %s11, 1
    %s19 = ssub.s32 %s11, %s18
    %p20 = scmp.eq.s32.totalorder %s19, 0
    %s22 = sadd.s32 %s21, 1
    %s23 = scalar_select %p20, %s21, %s22
    %p26 = pneg %p20
    %p27 = scmp.eq.s32.totalorder %s11, 7
    %p28 = por %p26, %p27
    %p29 = scmp.ne.s32.totalorder %s21, %s24
    %p30 = scmp.eq.s32.totalorder %s11, 0
    %p31 = por %p29, %p30
    %p32 = scmp.ne.s32.totalorder %s21, %s24
    %p33 = scmp.eq.s32.totalorder %s16, 7
    %p34 = por %p32, %p33
    %p35 = scmp.ne.s32.totalorder %s24, %s25
    %p36 = scmp.eq.s32.totalorder %s16, 0
    %p37 = por %p35, %p36
    %p38 = scmp.ne.s32.totalorder %s24, %s25
    %p39 = scmp.eq.s32.totalorder %s17, 7
    %p40 = por %p38, %p39
    %p42 = scmp.ne.s32.totalorder %s25, %s41
    %p43 = scmp.eq.s32.totalorder %s17, 0
    %p44 = por %p42, %p43
    %s46 = sadd.s32 %s45, 1
    %p49 = scmp.eq.s32.totalorder %s11, 7
    %p50 = scmp.ne.s32.totalorder %s45, %s47
    %p51 = scmp.eq.s32.totalorder %s11, 0
    %p52 = por %p50, %p51
    %p53 = scmp.ne.s32.totalorder %s45, %s47
    %p54 = scmp.eq.s32.totalorder %s16, 7
    %p55 = por %p53, %p54
    %p56 = scmp.ne.s32.totalorder %s47, %s48
    %p57 = scmp.eq.s32.totalorder %s16, 0
    %p58 = por %p56, %p57
    %p59 = scmp.ne.s32.totalorder %s47, %s48
    %p60 = scmp.eq.s32.totalorder %s17, 7
    %p61 = por %p59, %p60
    %p63 = scmp.ne.s32.totalorder %s48, %s62
    %p64 = scmp.eq.s32.totalorder %s17, 0
    %p65 = por %p63, %p64
    %s67 = sadd.s32 %s66, 1
    %p70 = scmp.eq.s32.totalorder %s11, 7
    %p71 = scmp.ne.s32.totalorder %s66, %s68
    %p72 = scmp.eq.s32.totalorder %s11, 0
    %p73 = por %p71, %p72
    %p74 = scmp.ne.s32.totalorder %s66, %s68
    %p75 = scmp.eq.s32.totalorder %s16, 7
    %p76 = por %p74, %p75
    %p77 = scmp.ne.s32.totalorder %s68, %s69
    %p78 = scmp.eq.s32.totalorder %s16, 0
    %p79 = por %p77, %p78
    %p80 = scmp.ne.s32.totalorder %s68, %s69
    %p81 = scmp.eq.s32.totalorder %s17, 7
    %p82 = por %p80, %p81
    %p84 = scmp.ne.s32.totalorder %s69, %s83
    %p85 = scmp.eq.s32.totalorder %s17, 0
    %p86 = por %p84, %p85
    %s88 = sadd.s32 %s87, 1
    %p91 = scmp.eq.s32.totalorder %s11, 7
    %p92 = scmp.ne.s32.totalorder %s87, %s89
    %p93 = scmp.eq.s32.totalorder %s11, 0
    %p94 = por %p92, %p93
    %p95 = scmp.ne.s32.totalorder %s87, %s89
    %p96 = scmp.eq.s32.totalorder %s16, 7
    %p97 = por %p95, %p96
    %p98 = scmp.ne.s32.totalorder %s89, %s90
    %p99 = scmp.eq.s32.totalorder %s16, 0
    %p100 = por %p98, %p99
    %p101 = scmp.ne.s32.totalorder %s89, %s90
    %p102 = scmp.eq.s32.totalorder %s17, 7
    %p103 = por %p101, %p102
    %p105 = scmp.ne.s32.totalorder %s90, %s104
    %p106 = scmp.eq.s32.totalorder %s17, 0
    %p107 = por %p105, %p106
    %s109 = sadd.s32 %s108, 1
    %p112 = scmp.eq.s32.totalorder %s11, 7
    %p113 = scmp.ne.s32.totalorder %s108, %s110
    %p114 = scmp.eq.s32.totalorder %s11, 0
    %p115 = por %p113, %p114
    %p116 = scmp.ne.s32.totalorder %s108, %s110
    %p117 = scmp.eq.s32.totalorder %s16, 7
    %p118 = por %p116, %p117
    %p119 = scmp.ne.s32.totalorder %s110, %s111
    %p120 = scmp.eq.s32.totalorder %s16, 0
    %p121 = por %p119, %p120
    %p122 = scmp.ne.s32.totalorder %s110, %s111
    %p123 = scmp.eq.s32.totalorder %s17, 7
    %p124 = por %p122, %p123
    %p126 = scmp.ne.s32.totalorder %s111, %s125
    %p127 = scmp.eq.s32.totalorder %s17, 0
    %p128 = por %p126, %p127
    %s129 = ssub.s32 %s11, %s18
    %p130 = scmp.eq.s32.totalorder %s129, 0
    %s132 = sadd.s32 %s131, 1
    %s133 = scalar_select %p130, %s131, %s132
    %p136 = pneg %p130
    %p137 = scmp.eq.s32.totalorder %s11, 7
    %p138 = por %p136, %p137
    %p139 = scmp.ne.s32.totalorder %s131, %s134
    %p140 = scmp.eq.s32.totalorder %s11, 0
    %p141 = por %p139, %p140
    %p142 = scmp.ne.s32.totalorder %s131, %s134
    %p143 = scmp.eq.s32.totalorder %s16, 7
    %p144 = por %p142, %p143
    %p145 = scmp.ne.s32.totalorder %s134, %s135
    %p146 = scmp.eq.s32.totalorder %s16, 0
    %p147 = por %p145, %p146
    %p148 = scmp.ne.s32.totalorder %s134, %s135
    %p149 = scmp.eq.s32.totalorder %s17, 7
    %p150 = por %p148, %p149
    %p152 = scmp.ne.s32.totalorder %s135, %s151
    %p153 = scmp.eq.s32.totalorder %s17, 0
    %p154 = por %p152, %p153
    %p155 = scmp.le.s32.totalorder 1, %s11
    %p156 = scmp.lt.s32.totalorder %s11, 9
    %p157 = pnand %p155, %p156
    %p158 = pneg %p157
    // Predicated region
    $region9: #{tpu_custom_call.1} parent=5 // pred_check
      _
    $region10: #{tpu_custom_call.1} parent=5 // pred_check_branch
      %160 = sbr.rel (%p157) target = $region12
    $region11: #{tpu_custom_call.1} parent=5 // pred_region
      %s161 = ssub.s32 %s11, 1
      // Predicated region
      $region13: #{tpu_custom_call.1} parent=11 // pred_check
        %p162 = pneg %p58
      $region14: #{tpu_custom_call.1} parent=11 // pred_check_branch
        %164 = sbr.rel (%p162) target = $region16
      $region15: #{tpu_custom_call.1} parent=11 // pred_region
        _
      $region16: #{tpu_custom_call.1} parent=11 // pred_fallthru
        _
      // Predicated region
      $region17: #{tpu_custom_call.1} parent=11 // pred_check
        %p165 = pneg %p79
      $region18: #{tpu_custom_call.1} parent=11 // pred_check_branch
        %167 = sbr.rel (%p165) target = $region20
      $region19: #{tpu_custom_call.1} parent=11 // pred_region
        _
      $region20: #{tpu_custom_call.1} parent=11 // pred_fallthru
        _
      // Predicated region
      $region21: #{tpu_custom_call.1} parent=11 // pred_check
        %p168 = pneg %p100
      $region22: #{tpu_custom_call.1} parent=11 // pred_check_branch
        %170 = sbr.rel (%p168) target = $region24
      $region23: #{tpu_custom_call.1} parent=11 // pred_region
        _
      $region24: #{tpu_custom_call.1} parent=11 // pred_fallthru
        _
      // Predicated region
      $region25: #{tpu_custom_call.1} parent=11 // pred_check
        %p171 = pneg %p121
      $region26: #{tpu_custom_call.1} parent=11 // pred_check_branch
        %173 = sbr.rel (%p171) target = $region28
      $region27: #{tpu_custom_call.1} parent=11 // pred_region
        _
      $region28: #{tpu_custom_call.1} parent=11 // pred_fallthru
        _
    $region12: #{tpu_custom_call.1} parent=5 // pred_fallthru
      _
    %p174 = scmp.lt.s32.totalorder %s11, 8
    // Predicated region
    $region29: #{tpu_custom_call.1} parent=5 // pred_check
      %p175 = pneg %p174
    $region30: #{tpu_custom_call.1} parent=5 // pred_check_branch
      %177 = sbr.rel (%p175) target = $region32
    $region31: #{tpu_custom_call.1} parent=5 // pred_region
      // Predicated region
      $region33: #{tpu_custom_call.1} parent=31 // pred_check
        %p178 = pneg %p31
      $region34: #{tpu_custom_call.1} parent=31 // pred_check_branch
        %180 = sbr.rel (%p178) target = $region36
      $region35: #{tpu_custom_call.1} parent=31 // pred_region
        %s181 = smul.u32 4, %s11
        %p182 = scmp.lt.s32.totalorder %s181, 31
        %s183 = scalar_select %p182, %s181, 31
        %s184 = smul.addr %s183, 8
        %s185 = scalar_lea.vmem %s0, %s184
        %s186 = smul.u32 4, %s11
      $region36: #{tpu_custom_call.1} parent=31 // pred_fallthru
        _
    $region32: #{tpu_custom_call.1} parent=5 // pred_fallthru
      _
    %p187 = scmp.le.s32.totalorder 1, %s11
    %p188 = scmp.lt.s32.totalorder %s11, 9
    %p189 = pnand %p187, %p188
    %p190 = pneg %p189
    // Predicated region
    $region37: #{tpu_custom_call.1} parent=5 // pred_check
      _
    $region38: #{tpu_custom_call.1} parent=5 // pred_check_branch
      %192 = sbr.rel (%p189) target = $region40
    $region39: #{tpu_custom_call.1} parent=5 // pred_region
      %s193 = ssub.s32 %s11, 1
      %s194 = smul.u32 4, %s16
      %p195 = scmp.lt.s32.totalorder %s194, 31
      %s196 = scalar_select %p195, %s194, 31
      %s197 = smul.addr %s196, 8
      %s198 = scalar_lea.vmem %s0, %s197
      %p199 = pneg %p37
      %p200 = pneg %p34
      %p201 = pneg %p58
      %p202 = pneg %p55
      %p203 = pneg %p79
      %p204 = pneg %p76
      %p205 = pneg %p100
      %p206 = pneg %p97
      %p207 = pneg %p121
      %p208 = pneg %p118
      %p209 = pneg %p147
      %p210 = pneg %p144
      %s211 = smul.u32 4, %s16
      %p212 = scmp.lt.s32.totalorder %s211, 31
      %s213 = scalar_select %p212, %s211, 31
      %s214 = smul.addr %s213, 8
      %s215 = scalar_lea.vmem %s5, %s214
      %s216 = smul.u32 4, %s16
      %p217 = scmp.lt.s32.totalorder %s216, 31
      %s218 = scalar_select %p217, %s216, 31
      %s219 = smul.addr %s218, 8
      %s220 = scalar_lea.vmem %s0, %s219
      %s221 = smul.u32 4, %s16
      %s222 = smul.u32 4, %s16
      %p223 = scmp.lt.s32.totalorder %s222, 31
      %s224 = scalar_select %p223, %s222, 31
      %s225 = smul.addr %s224, 8
      %s226 = scalar_lea.vmem %s5, %s225
      %s227 = smul.u32 4, %s16
      %v228 = vld [vmem:[%s220] sm:$0xff]
      %v229 = vld [vmem:[%s220 + $0x8] sm:$0xff]
      %v230 = vld [vmem:[%s220 + $0x10] sm:$0xff]
      %v231 = vld [vmem:[%s220 + $0x18] sm:$0xff]
      %v232 = vld [vmem:[%s1] sm:$0xff]
      %v233 = vld [vmem:[%s2] sm:$0x1]
      %v235 = vlaneseq
      %v236 = vshrl.u32 %v235, 7
      %v237 = vsub.s32 0, %v236
      %v238 = vrot.slane %v233, %v237
      %vm240 = vcmask 64512
      %v242 = vsel %vm240, %v228, 0
      %v245 = vsel %vm240, %v229, 0
      %v248 = vsel %vm240, %v230, 0
      %v251 = vsel %vm240, %v231, 0
      %253 = vmatprep.subr.mxu0 0.0
      %254 = vmatpush1.msra.mxu0 %v232
      %255 = vmatprep.subr.mxu0 0.0
      %256 = vmatpush1.msra.mxu0 0.0
      %257 = vmatprep.subr.mxu0 0.0
      %258 = vmatpush1.msra.mxu0 0.0
      %259 = vmatprep.subr.mxu0 0.0
      %260 = vmatpush1.msra.mxu0 0.0
      %261 = vmatprep.subr.mxu0 0.0
      %262 = vmatpush1.msra.mxu0 0.0
      %263 = vmatprep.subr.mxu0 0.0
      %264 = vmatpush1.msra.mxu0 0.0
      %265 = vmatprep.subr.mxu0 0.0
      %266 = vmatpush1.msra.mxu0 0.0
      %267 = vmatprep.subr.mxu0 0.0
      %268 = vmatpush1.msra.mxu0 0.0
      %269 = vmatprep.subr.mxu0 0.0
      %270 = vmatpush1.msra.mxu0 0.0
      %271 = vmatprep.subr.mxu0 0.0
      %272 = vmatpush1.msra.mxu0 0.0
      %273 = vmatprep.subr.mxu0 0.0
      %274 = vmatpush1.msra.mxu0 0.0
      %275 = vmatprep.subr.mxu0 0.0
      %276 = vmatpush1.msra.mxu0 0.0
      %277 = vmatprep.subr.mxu0 0.0
      %278 = vmatpush1.msra.mxu0 0.0
      %279 = vmatprep.subr.mxu0 0.0
      %280 = vmatpush1.msra.mxu0 0.0
      %281 = vmatprep.subr.mxu0 0.0
      %282 = vmatpush1.msra.mxu0 0.0
      %283 = vmatprep.subr.mxu0 0.0
      %284 = vmatpush1.msra.mxu0 0.0
      %285 = vmatprep.subr.mxu0 0.0
      %286 = vmatpush1.msra.mxu0 0.0
      %287 = vmatprep.subr.mxu0 0.0
      %288 = vmatpush1.msra.mxu0 0.0
      %289 = vmatprep.subr.mxu0 0.0
      %290 = vmatpush1.msra.mxu0 0.0
      %291 = vmatprep.subr.mxu0 0.0
      %292 = vmatpush1.msra.mxu0 0.0
      %293 = vmatprep.subr.mxu0 0.0
      %294 = vmatpush1.msra.mxu0 0.0
      %295 = vmatprep.subr.mxu0 0.0
      %296 = vmatpush1.msra.mxu0 0.0
      %297 = vmatprep.subr.mxu0 0.0
      %298 = vmatpush1.msra.mxu0 0.0
      %299 = vmatprep.subr.mxu0 0.0
      %300 = vmatpush1.msra.mxu0 0.0
      %301 = vmatprep.subr.mxu0 0.0
      %302 = vmatpush1.msra.mxu0 0.0
      %303 = vmatprep.subr.mxu0 0.0
      %304 = vmatpush1.msra.mxu0 0.0
      %305 = vmatprep.subr.mxu0 0.0
      %306 = vmatpush1.msra.mxu0 0.0
      %307 = vmatprep.subr.mxu0 0.0
      %308 = vmatpush1.msra.mxu0 0.0
      %309 = vmatprep.subr.mxu0 0.0
      %310 = vmatpush1.msra.mxu0 0.0
      %311 = vmatprep.subr.mxu0 0.0
      %312 = vmatpush1.msra.mxu0 0.0
      %313 = vmatprep.subr.mxu0 0.0
      %314 = vmatpush1.msra.mxu0 0.0
      %315 = vmatprep.subr.mxu0 0.0
      %316 = vmatpush1.msra.mxu0 0.0
      %317 = vmatprep.mubr.f32.mxu0 0.0
      %318 = vmatmul.mubr.f32.gmra.mrb[0].mxu0 %v242
      %v319 = vpop.f32.mrb[0].mxu0
      %v320 = vadd.f32 %v238, %v319
      %v321 = vpop.f32.mrb[0].mxu0
      %322 = vmatprep.mubr.f32.mxu0 0.0
      %323 = vmatmul.mubr.f32.gmra.mrb[0].mxu0 %v245
      %v324 = vpop.f32.mrb[0].mxu0
      %v325 = vadd.f32 %v238, %v324
      %v326 = vpop.f32.mrb[0].mxu0
      %327 = vmatprep.mubr.f32.mxu0 0.0
      %328 = vmatmul.mubr.f32.gmra.mrb[0].mxu0 %v248
      %v329 = vpop.f32.mrb[0].mxu0
      %v330 = vadd.f32 %v238, %v329
      %v331 = vpop.f32.mrb[0].mxu0
      %332 = vmatprep.mubr.f32.mxu0 0.0
      %333 = vmatmul.mubr.f32.gmra.mrb[0].mxu0 %v251
      %v334 = vpop.f32.mrb[0].mxu0
      %v335 = vadd.f32 %v238, %v334
      %v336 = vpop.f32.mrb[0].mxu0
      %337 = vdwg.mxu0
      %v338 = vsub.f32 0.0, %v320
      %v339 = vsub.f32 0.0, %v325
      %v340 = vsub.f32 0.0, %v330
      %v341 = vsub.f32 0.0, %v335
      %v342 = vmul.f32 %v338, 1.442695
      %v343 = vpow.pop %v342
      %v344 = vmul.f32 %v339, 1.442695
      %v345 = vpow.pop %v344
      %v346 = vmul.f32 %v340, 1.442695
      %v347 = vpow.pop %v346
      %v348 = vmul.f32 %v341, 1.442695
      %v349 = vpow.pop %v348
      %v350 = vadd.f32 %v343, 1.0
      %v351 = vadd.f32 %v345, 1.0
      %v352 = vadd.f32 %v347, 1.0
      %v353 = vadd.f32 %v349, 1.0
      %v354 = vrcp.pop %v350
      %v355 = vrcp.pop %v351
      %v356 = vrcp.pop %v352
      %v357 = vrcp.pop %v353
      %v358 = vld [vmem:[%s3] sm:$0xff]
      %v359 = vld [vmem:[%s3 + $0x8] sm:$0xff]
      %v360 = vld [vmem:[%s3 + $0x10] sm:$0xff]
      %v361 = vld [vmem:[%s3 + $0x18] sm:$0xff]
      %v362 = vld [vmem:[%s3 + $0x20] sm:$0xff]
      %v363 = vld [vmem:[%s3 + $0x28] sm:$0xff]
      %v364 = vld [vmem:[%s3 + $0x30] sm:$0xff]
      %v365 = vld [vmem:[%s3 + $0x38] sm:$0xff]
      %v366 = vld [vmem:[%s3 + $0x40] sm:$0xff]
      %v367 = vld [vmem:[%s3 + $0x48] sm:$0xff]
      %v368 = vld [vmem:[%s3 + $0x50] sm:$0xff]
      %v369 = vld [vmem:[%s3 + $0x58] sm:$0xff]
      %v370 = vld [vmem:[%s3 + $0x60] sm:$0xff]
      %v371 = vld [vmem:[%s3 + $0x68] sm:$0xff]
      %v372 = vld [vmem:[%s3 + $0x70] sm:$0xff]
      %v373 = vld [vmem:[%s3 + $0x78] sm:$0xff]
      %v374 = vld [vmem:[%s4] sm:$0x1]
      %v376 = vlaneseq
      %v377 = vshrl.u32 %v376, 7
      %v378 = vsub.s32 0, %v377
      %v379 = vrot.slane %v374, %v378
      %381 = vmatprep.subr.mxu0 0.0
      %382 = vmatpush1.msra.mxu0 %v358
      %383 = vmatprep.subr.mxu0 0.0
      %384 = vmatpush1.msra.mxu0 %v359
      %385 = vmatprep.subr.mxu0 0.0
      %386 = vmatpush1.msra.mxu0 %v360
      %387 = vmatprep.subr.mxu0 0.0
      %388 = vmatpush1.msra.mxu0 %v361
      %389 = vmatprep.subr.mxu0 0.0
      %390 = vmatpush1.msra.mxu0 %v362
      %391 = vmatprep.subr.mxu0 0.0
      %392 = vmatpush1.msra.mxu0 %v363
      %393 = vmatprep.subr.mxu0 0.0
      %394 = vmatpush1.msra.mxu0 %v364
      %395 = vmatprep.subr.mxu0 0.0
      %396 = vmatpush1.msra.mxu0 %v365
      %397 = vmatprep.subr.mxu0 0.0
      %398 = vmatpush1.msra.mxu0 %v366
      %399 = vmatprep.subr.mxu0 0.0
      %400 = vmatpush1.msra.mxu0 %v367
      %401 = vmatprep.subr.mxu0 0.0
      %402 = vmatpush1.msra.mxu0 %v368
      %403 = vmatprep.subr.mxu0 0.0
      %404 = vmatpush1.msra.mxu0 %v369
      %405 = vmatprep.subr.mxu0 0.0
      %406 = vmatpush1.msra.mxu0 %v370
      %407 = vmatprep.subr.mxu0 0.0
      %408 = vmatpush1.msra.mxu0 %v371
      %409 = vmatprep.subr.mxu0 0.0
      %410 = vmatpush1.msra.mxu0 %v372
      %411 = vmatprep.subr.mxu0 0.0
      %412 = vmatpush1.msra.mxu0 %v373
      %413 = vmatprep.subr.mxu0 0.0
      %414 = vmatpush1.msra.mxu0 0.0
      %415 = vmatprep.subr.mxu0 0.0
      %416 = vmatpush1.msra.mxu0 0.0
      %417 = vmatprep.subr.mxu0 0.0
      %418 = vmatpush1.msra.mxu0 0.0
      %419 = vmatprep.subr.mxu0 0.0
      %420 = vmatpush1.msra.mxu0 0.0
      %421 = vmatprep.subr.mxu0 0.0
      %422 = vmatpush1.msra.mxu0 0.0
      %423 = vmatprep.subr.mxu0 0.0
      %424 = vmatpush1.msra.mxu0 0.0
      %425 = vmatprep.subr.mxu0 0.0
      %426 = vmatpush1.msra.mxu0 0.0
      %427 = vmatprep.subr.mxu0 0.0
      %428 = vmatpush1.msra.mxu0 0.0
      %429 = vmatprep.subr.mxu0 0.0
      %430 = vmatpush1.msra.mxu0 0.0
      %431 = vmatprep.subr.mxu0 0.0
      %432 = vmatpush1.msra.mxu0 0.0
      %433 = vmatprep.subr.mxu0 0.0
      %434 = vmatpush1.msra.mxu0 0.0
      %435 = vmatprep.subr.mxu0 0.0
      %436 = vmatpush1.msra.mxu0 0.0
      %437 = vmatprep.subr.mxu0 0.0
      %438 = vmatpush1.msra.mxu0 0.0
      %439 = vmatprep.subr.mxu0 0.0
      %440 = vmatpush1.msra.mxu0 0.0
      %441 = vmatprep.subr.mxu0 0.0
      %442 = vmatpush1.msra.mxu0 0.0
      %443 = vmatprep.subr.mxu0 0.0
      %444 = vmatpush1.msra.mxu0 0.0
      %445 = vmatprep.mubr.f32.mxu0 0.0
      %446 = vmatmul.mubr.f32.gmra.mrb[0].mxu0 %v354
      %v447 = vpop.f32.mrb[0].mxu0
      %v448 = vadd.f32 %v379, %v447
      %v449 = vpop.f32.mrb[0].mxu0
      %450 = vmatprep.mubr.f32.mxu0 0.0
      %451 = vmatmul.mubr.f32.gmra.mrb[0].mxu0 %v355
      %v452 = vpop.f32.mrb[0].mxu0
      %v453 = vadd.f32 %v379, %v452
      %v454 = vpop.f32.mrb[0].mxu0
      %455 = vmatprep.mubr.f32.mxu0 0.0
      %456 = vmatmul.mubr.f32.gmra.mrb[0].mxu0 %v356
      %v457 = vpop.f32.mrb[0].mxu0
      %v458 = vadd.f32 %v379, %v457
      %v459 = vpop.f32.mrb[0].mxu0
      %460 = vmatprep.mubr.f32.mxu0 0.0
      %461 = vmatmul.mubr.f32.gmra.mrb[0].mxu0 %v357
      %v462 = vpop.f32.mrb[0].mxu0
      %v463 = vadd.f32 %v379, %v462
      %v464 = vpop.f32.mrb[0].mxu0
      %465 = vdwg.mxu0
      %v466 = vsub.f32 0.0, %v448
      %v467 = vsub.f32 0.0, %v453
      %v468 = vsub.f32 0.0, %v458
      %v469 = vsub.f32 0.0, %v463
      %v470 = vmul.f32 %v466, 1.442695
      %v471 = vpow.pop %v470
      %v472 = vmul.f32 %v467, 1.442695
      %v473 = vpow.pop %v472
      %v474 = vmul.f32 %v468, 1.442695
      %v475 = vpow.pop %v474
      %v476 = vmul.f32 %v469, 1.442695
      %v477 = vpow.pop %v476
      %v478 = vadd.f32 %v471, 1.0
      %v479 = vadd.f32 %v473, 1.0
      %v480 = vadd.f32 %v475, 1.0
      %v481 = vadd.f32 %v477, 1.0
      %v482 = vrcp.pop %v478
      %v483 = vrcp.pop %v479
      %v484 = vrcp.pop %v480
      %v485 = vrcp.pop %v481
      %vm486 = vcmask 31744
      %487 = vst.msk [vmem:[%s226] sm:$0xff] %vm486, %v482
      %488 = vst.msk [vmem:[%s226 + $0x8] sm:$0xff] %vm486, %v483
      %489 = vst.msk [vmem:[%s226 + $0x10] sm:$0xff] %vm486, %v484
      %490 = vst.msk [vmem:[%s226 + $0x18] sm:$0xff] %vm486, %v485
      %s491 = smul.u32 4, %s16
      %p492 = scmp.lt.s32.totalorder %s491, 31
      %s493 = scalar_select %p492, %s491, 31
      %s494 = smul.addr %s493, 8
      %s495 = scalar_lea.vmem %s5, %s494
      // Predicated region
      $region41: #{tpu_custom_call.1} parent=39 // pred_check
        %p496 = pneg %p144
      $region42: #{tpu_custom_call.1} parent=39 // pred_check_branch
        %498 = sbr.rel (%p496) target = $region44
      $region43: #{tpu_custom_call.1} parent=39 // pred_region
        %s499 = smul.u32 4, %s16
      $region44: #{tpu_custom_call.1} parent=39 // pred_fallthru
        _
    $region40: #{tpu_custom_call.1} parent=5 // pred_fallthru
      _
    %p500 = scmp.le.s32.totalorder 2, %s11
    // Predicated region
    $region45: #{tpu_custom_call.1} parent=5 // pred_check
      %p501 = pneg %p500
    $region46: #{tpu_custom_call.1} parent=5 // pred_check_branch
      %503 = sbr.rel (%p501) target = $region48
    $region47: #{tpu_custom_call.1} parent=5 // pred_region
      %s504 = ssub.s32 %s11, 2
      // Predicated region
      $region49: #{tpu_custom_call.1} parent=47 // pred_check
        %p505 = pneg %p150
      $region50: #{tpu_custom_call.1} parent=47 // pred_check_branch
        %507 = sbr.rel (%p505) target = $region52
      $region51: #{tpu_custom_call.1} parent=47 // pred_region
        %s508 = smul.u32 4, %s17
        %p509 = scmp.lt.s32.totalorder %s508, 31
        %s510 = scalar_select %p509, %s508, 31
        %s511 = smul.addr %s510, 8
        %s512 = scalar_lea.vmem %s5, %s511
      $region52: #{tpu_custom_call.1} parent=47 // pred_fallthru
        _
    $region48: #{tpu_custom_call.1} parent=5 // pred_fallthru
      _
  $region6: #{tpu_custom_call.1} parent=0 // loop_footer
    %s15 = sadd.s32 1, %s11
  $region7: #{tpu_custom_call.1} parent=0 // loop_footer_branch
    %10 = sbr.rel target = $region3
  $region8: #{tpu_custom_call.1} parent=0 // loop_exit
    _

</llo_original>
